<compile_context>
chip_gen: v7x
topology: tpu7x:2x2x1
jax: 0.10.0
libtpu: 0.0.40
codegen_flags: <defaults>
</compile_context>

<pallas_src>
import jax
import jax.numpy as jnp
import numpy as np
from jax import lax
from jax.experimental import pallas as pl
from jax.experimental.pallas import tpu as pltpu

NOISE_SIGMA = 0.1
KSIZE = 3          # 3x3 operator
N_UNIFORM = 12     # Irwin-Hall uniforms per normal draw


# ----------------------------------------------------------------------------
# Counter-based RNG (works in Mosaic and interpret mode; reproducible on host).
# ----------------------------------------------------------------------------
def _hash_u32(x):
    """lowbias32 integer hash (Wellons); good avalanche for consecutive counters."""
    x = x ^ (x >> jnp.uint32(16))
    x = x * jnp.uint32(0x7FEB352D)
    x = x ^ (x >> jnp.uint32(15))
    x = x * jnp.uint32(0x846CA68B)
    x = x ^ (x >> jnp.uint32(16))
    return x


def _std_normal_from_counter(lin_i32, seed_i32):
    """Approximate N(0,1) per element, deterministic in (global index, seed).

    Irwin-Hall: sum of 12 hash-derived U[0,1) minus 6 (mean 0, variance 1).
    Pure VPU integer/float ops — no EUP transcendentals, no pltpu.prng_*.
    The same function is evaluated host-side for a bit-exact reference.
    """
    base = lin_i32.astype(jnp.uint32) * jnp.uint32(N_UNIFORM)
    mix = _hash_u32(seed_i32.astype(jnp.uint32) + jnp.uint32(0x9E3779B9))
    s = jnp.zeros(lin_i32.shape, jnp.float32)
    inv24 = jnp.float32(1.0 / 16777216.0)          # 2**-24, exact
    for k in range(N_UNIFORM):
        h = _hash_u32((base + jnp.uint32(k)) ^ mix)
        u = (h >> jnp.uint32(8)).astype(jnp.int32).astype(jnp.float32) * inv24
        s = s + u
    return s - jnp.float32(6.0)


# ----------------------------------------------------------------------------
# Kernel
# ----------------------------------------------------------------------------
def _make_kernel(TH, H, W, noise_sigma):
    """Per-program kernel.

    Ref shapes seen by the kernel (leading unit dims squeezed by the BlockSpec):
      seed_ref : (1,)        int32, SMEM
      w_ref    : (B*C, 9)    f32 taps, SMEM (scalar broadcast multipliers)
      x_ref    : (H+2, W+2)  halo-padded channel slab, resident across row tiles
      o_ref    : (TH, W)     output row tile
    """

    def kernel(seed_ref, w_ref, x_ref, o_ref):
        b = pl.program_id(0)                       # which (batch, channel) plane
        i = pl.program_id(1)                       # which row tile
        row0 = pl.multiple_of(i * TH, TH)

        # Depthwise 3x3 "same" conv.  One row-window load per di, reused across
        # the 3 dj lane shifts; 3 partial accumulators for VALU ILP.
        acc = [jnp.zeros((TH, W), jnp.float32) for _ in range(KSIZE)]
        for di in range(KSIZE):
            rows = x_ref[pl.ds(row0 + di, TH), :]          # (TH, W+2)
            for dj in range(KSIZE):
                acc[dj] = acc[dj] + rows[:, dj:dj + W] * w_ref[b, KSIZE * di + dj]
        a_x = (acc[0] + acc[1]) + acc[2]

        # In-kernel noise: unique 32-bit counter per output element.
        row = i * TH + lax.broadcasted_iota(jnp.int32, (TH, W), 0)
        col = lax.broadcasted_iota(jnp.int32, (TH, W), 1)
        lin = (b * H + row) * W + col
        z = _std_normal_from_counter(lin, seed_ref[0])

        o_ref[...] = a_x + jnp.float32(noise_sigma) * z

    return kernel


def _pick_row_tile(H, W):
    """Row-tile height: multiple of 8 dividing H, ~<=2 MiB of f32 per output
    tile, preferring >=2 row tiles (keeps both v7x TensorCores busy even when
    B*C is small)."""
    if H % 8 != 0:
        # TODO(synk): cdiv grid + masked remainder tile for H not a multiple of 8.
        return H
    max_rows = max(8, (2 * 1024 * 1024) // (4 * max(W, 1)))
    candidates = [t for t in range(8, H + 1, 8) if H % t == 0]
    good = [t for t in candidates if t <= max_rows and H // t >= 2]
    if good:
        return max(good)
    small = [t for t in candidates if t <= max_rows]
    if small:
        return max(small)
    return min(candidates)


# ----------------------------------------------------------------------------
# Wrapper
# ----------------------------------------------------------------------------
def operator_plus_noise(x, weights, noise_sigma=NOISE_SIGMA, *, seed=0):
    """A(x) + noise_sigma * N(0,1); A = per-channel 3x3 'same' conv.

    x: (B, C, H, W) f32;  weights: (C, 3, 3) f32.
    """
    B, C, H, W = x.shape
    BC = B * C
    TH = _pick_row_tile(H, W)
    n_h = H // TH if H % TH == 0 else 1

    # Natural layout, no transposes: (BC, H+2, W+2) halo-padded planes.
    xp = jnp.pad(x.reshape(BC, H, W), ((0, 0), (1, 1), (1, 1)))
    # Per-plane taps as SMEM scalars: row bc -> weights[bc % C] flattened to 9.
    w_flat = jnp.tile(weights.reshape(C, KSIZE * KSIZE), (B, 1))   # (BC, 9)
    seed_arr = jnp.asarray([seed], jnp.int32)

    kernel = _make_kernel(TH, H, W, noise_sigma)

    out = pl.pallas_call(
        kernel,
        out_shape=jax.ShapeDtypeStruct((BC, H, W), jnp.float32),
        grid=(BC, n_h),
        in_specs=[
            pl.BlockSpec(memory_space=pltpu.MemorySpace.SMEM),                 # seed
            pl.BlockSpec(memory_space=pltpu.MemorySpace.SMEM),                 # taps
            # Index map ignores the (innermost) row axis -> the halo slab of a
            # plane is DMA'd once and stays resident across its row tiles.
            pl.BlockSpec((None, H + 2, W + 2), lambda b, i: (b, 0, 0)),
        ],
        out_specs=pl.BlockSpec((None, TH, W), lambda b, i: (b, i, 0)),
        compiler_params=pltpu.CompilerParams(
            dimension_semantics=("parallel", "arbitrary"),
        ),
    )(seed_arr, w_flat, xp)

    return out.reshape(B, C, H, W)


# ----------------------------------------------------------------------------
# Pure-JAX references
# ----------------------------------------------------------------------------
def _conv_reference(x, weights):
    """Depthwise 3x3 'same' conv, NCHW."""
    B, C, H, W = x.shape
    xp = jnp.pad(x, ((0, 0), (0, 0), (1, 1), (1, 1)))
    acc = jnp.zeros((B, C, H, W), jnp.float32)
    for di in range(KSIZE):
        for dj in range(KSIZE):
            acc = acc + xp[:, :, di:di + H, dj:dj + W] * weights[None, :, di, dj, None, None]
    return acc


def _noise_reference(shape, seed):
    """Host-side replay of the in-kernel counter RNG (bit-identical)."""
    B, C, H, W = shape
    lin = jnp.arange(B * C * H * W, dtype=jnp.int32).reshape(B, C, H, W)
    return _std_normal_from_counter(lin, jnp.int32(seed))


if __name__ == "__main__":
    B, C, H, W = 2, 4, 16, 16

    key = jax.random.PRNGKey(0)
    x = jax.random.normal(key, (B, C, H, W), dtype=jnp.float32)

    # Deterministic "internal operator" parameters: per-channel Gaussian blur.
    blur = jnp.array([[1.0, 2.0, 1.0],
                      [2.0, 4.0, 2.0],
                      [1.0, 2.0, 1.0]], dtype=jnp.float32) / 16.0
    weights = jnp.tile(blur[None, :, :], (C, 1, 1))      # (C, 3, 3)

    seed = 1234
    out = operator_plus_noise(x, weights, seed=seed)
    out = jax.block_until_ready(out)

    # Full-forward check: conv reference + host replay of the exact same
    # counter-based noise the kernel generated on-chip.
    a_x = _conv_reference(x, weights)
    z_ref = _noise_reference((B, C, H, W), seed)
    ref = a_x + jnp.float32(NOISE_SIGMA) * z_ref
    np.testing.assert_allclose(np.asarray(out), np.asarray(ref), rtol=1e-5, atol=1e-5)

    # The injected noise behaves like sigma * N(0,1).
    resid = np.asarray(out) - np.asarray(a_x)
    assert abs(float(resid.mean())) < 0.02, resid.mean()
    assert 0.05 < float(resid.std()) < 0.15, resid.std()

    print("KERNEL_OK")
</pallas_src>

<mosaic_0001>
module attributes {stable_mosaic.version = 11 : i64} {
  func.func @kernel(%arg0: i32, %arg1: i32, %arg2: memref<1xi32, #tpu.memory_space<smem>>, %arg3: memref<8x9xf32, #tpu.memory_space<smem>>, %arg4: memref<1x18x18xf32, #tpu.memory_space<vmem>>, %arg5: memref<1x8x16xf32, #tpu.memory_space<vmem>>) attributes {dimension_semantics = [#tpu.dimension_semantics<parallel>, #tpu.dimension_semantics<arbitrary>], iteration_bounds = array<i64: 8, 2>, scalar_prefetch = 0 : i64, scratch_operands = 0 : i64, tpu.core_type = #tpu.core_type<tc>, window_params = [{transform_indices = @transform_0, window_bounds = array<i64: 1>}, {transform_indices = @transform_1, window_bounds = array<i64: 8, 9>}, {transform_indices = @transform_2, window_bounds = array<i64: 1, 18, 18>}, {transform_indices = @transform_3, window_bounds = array<i64: 1, 8, 16>}]} {
    %c8_i32 = arith.constant 8 : i32
    %0 = arith.muli %arg1, %c8_i32 : i32
    %1 = tpu.assume_multiple %0, 8 : i32
    %cst = arith.constant 0.000000e+00 : f32
    %2 = vector.broadcast %cst : f32 to vector<8x16xf32>
    %cst_0 = arith.constant 0.000000e+00 : f32
    %3 = vector.broadcast %cst_0 : f32 to vector<8x16xf32>
    %cst_1 = arith.constant 0.000000e+00 : f32
    %4 = vector.broadcast %cst_1 : f32 to vector<8x16xf32>
    %c0_i32 = arith.constant 0 : i32
    %5 = arith.addi %1, %c0_i32 : i32
    %c0 = arith.constant 0 : index
    %6 = arith.index_cast %5 : i32 to index
    %c0_2 = arith.constant 0 : index
    %7 = vector.load %arg4[%c0, %6, %c0_2] : memref<1x18x18xf32, #tpu.memory_space<vmem>>, vector<1x8x18xf32>
    %8 = vector.shape_cast %7 : vector<1x8x18xf32> to vector<8x18xf32>
    %9 = vector.extract_strided_slice %8 {offsets = [0, 0], sizes = [8, 16], strides = [1, 1]} : vector<8x18xf32> to vector<8x16xf32>
    %10 = arith.index_cast %arg0 : i32 to index
    %c0_3 = arith.constant 0 : index
    %11 = memref.load %arg3[%10, %c0_3] : memref<8x9xf32, #tpu.memory_space<smem>>
    %12 = vector.broadcast %11 : f32 to vector<8x16xf32>
    %13 = arith.mulf %9, %12 : vector<8x16xf32>
    %14 = arith.addf %2, %13 : vector<8x16xf32>
    %15 = vector.extract_strided_slice %8 {offsets = [0, 1], sizes = [8, 16], strides = [1, 1]} : vector<8x18xf32> to vector<8x16xf32>
    %16 = arith.index_cast %arg0 : i32 to index
    %c1 = arith.constant 1 : index
    %17 = memref.load %arg3[%16, %c1] : memref<8x9xf32, #tpu.memory_space<smem>>
    %18 = vector.broadcast %17 : f32 to vector<8x16xf32>
    %19 = arith.mulf %15, %18 : vector<8x16xf32>
    %20 = arith.addf %3, %19 : vector<8x16xf32>
    %21 = vector.extract_strided_slice %8 {offsets = [0, 2], sizes = [8, 16], strides = [1, 1]} : vector<8x18xf32> to vector<8x16xf32>
    %22 = arith.index_cast %arg0 : i32 to index
    %c2 = arith.constant 2 : index
    %23 = memref.load %arg3[%22, %c2] : memref<8x9xf32, #tpu.memory_space<smem>>
    %24 = vector.broadcast %23 : f32 to vector<8x16xf32>
    %25 = arith.mulf %21, %24 : vector<8x16xf32>
    %26 = arith.addf %4, %25 : vector<8x16xf32>
    %c1_i32 = arith.constant 1 : i32
    %27 = arith.addi %1, %c1_i32 : i32
    %c0_4 = arith.constant 0 : index
    %28 = arith.index_cast %27 : i32 to index
    %c0_5 = arith.constant 0 : index
    %29 = vector.load %arg4[%c0_4, %28, %c0_5] : memref<1x18x18xf32, #tpu.memory_space<vmem>>, vector<1x8x18xf32>
    %30 = vector.shape_cast %29 : vector<1x8x18xf32> to vector<8x18xf32>
    %31 = vector.extract_strided_slice %30 {offsets = [0, 0], sizes = [8, 16], strides = [1, 1]} : vector<8x18xf32> to vector<8x16xf32>
    %32 = arith.index_cast %arg0 : i32 to index
    %c3 = arith.constant 3 : index
    %33 = memref.load %arg3[%32, %c3] : memref<8x9xf32, #tpu.memory_space<smem>>
    %34 = vector.broadcast %33 : f32 to vector<8x16xf32>
    %35 = arith.mulf %31, %34 : vector<8x16xf32>
    %36 = arith.addf %14, %35 : vector<8x16xf32>
    %37 = vector.extract_strided_slice %30 {offsets = [0, 1], sizes = [8, 16], strides = [1, 1]} : vector<8x18xf32> to vector<8x16xf32>
    %38 = arith.index_cast %arg0 : i32 to index
    %c4 = arith.constant 4 : index
    %39 = memref.load %arg3[%38, %c4] : memref<8x9xf32, #tpu.memory_space<smem>>
    %40 = vector.broadcast %39 : f32 to vector<8x16xf32>
    %41 = arith.mulf %37, %40 : vector<8x16xf32>
    %42 = arith.addf %20, %41 : vector<8x16xf32>
    %43 = vector.extract_strided_slice %30 {offsets = [0, 2], sizes = [8, 16], strides = [1, 1]} : vector<8x18xf32> to vector<8x16xf32>
    %44 = arith.index_cast %arg0 : i32 to index
    %c5 = arith.constant 5 : index
    %45 = memref.load %arg3[%44, %c5] : memref<8x9xf32, #tpu.memory_space<smem>>
    %46 = vector.broadcast %45 : f32 to vector<8x16xf32>
    %47 = arith.mulf %43, %46 : vector<8x16xf32>
    %48 = arith.addf %26, %47 : vector<8x16xf32>
    %c2_i32 = arith.constant 2 : i32
    %49 = arith.addi %1, %c2_i32 : i32
    %c0_6 = arith.constant 0 : index
    %50 = arith.index_cast %49 : i32 to index
    %c0_7 = arith.constant 0 : index
    %51 = vector.load %arg4[%c0_6, %50, %c0_7] : memref<1x18x18xf32, #tpu.memory_space<vmem>>, vector<1x8x18xf32>
    %52 = vector.shape_cast %51 : vector<1x8x18xf32> to vector<8x18xf32>
    %53 = vector.extract_strided_slice %52 {offsets = [0, 0], sizes = [8, 16], strides = [1, 1]} : vector<8x18xf32> to vector<8x16xf32>
    %54 = arith.index_cast %arg0 : i32 to index
    %c6 = arith.constant 6 : index
    %55 = memref.load %arg3[%54, %c6] : memref<8x9xf32, #tpu.memory_space<smem>>
    %56 = vector.broadcast %55 : f32 to vector<8x16xf32>
    %57 = arith.mulf %53, %56 : vector<8x16xf32>
    %58 = arith.addf %36, %57 : vector<8x16xf32>
    %59 = vector.extract_strided_slice %52 {offsets = [0, 1], sizes = [8, 16], strides = [1, 1]} : vector<8x18xf32> to vector<8x16xf32>
    %60 = arith.index_cast %arg0 : i32 to index
    %c7 = arith.constant 7 : index
    %61 = memref.load %arg3[%60, %c7] : memref<8x9xf32, #tpu.memory_space<smem>>
    %62 = vector.broadcast %61 : f32 to vector<8x16xf32>
    %63 = arith.mulf %59, %62 : vector<8x16xf32>
    %64 = arith.addf %42, %63 : vector<8x16xf32>
    %65 = vector.extract_strided_slice %52 {offsets = [0, 2], sizes = [8, 16], strides = [1, 1]} : vector<8x18xf32> to vector<8x16xf32>
    %66 = arith.index_cast %arg0 : i32 to index
    %c8 = arith.constant 8 : index
    %67 = memref.load %arg3[%66, %c8] : memref<8x9xf32, #tpu.memory_space<smem>>
    %68 = vector.broadcast %67 : f32 to vector<8x16xf32>
    %69 = arith.mulf %65, %68 : vector<8x16xf32>
    %70 = arith.addf %48, %69 : vector<8x16xf32>
    %71 = arith.addf %58, %64 : vector<8x16xf32>
    %72 = arith.addf %71, %70 : vector<8x16xf32>
    %c8_i32_8 = arith.constant 8 : i32
    %73 = arith.muli %arg1, %c8_i32_8 : i32
    %74 = tpu.iota {dimensions = array<i32: 0>} : vector<8x16xi32>
    %75 = vector.broadcast %73 : i32 to vector<8x16xi32>
    %76 = arith.addi %75, %74 : vector<8x16xi32>
    %77 = tpu.iota {dimensions = array<i32: 1>} : vector<8x16xi32>
    %c16_i32 = arith.constant 16 : i32
    %78 = arith.muli %arg0, %c16_i32 : i32
    %79 = vector.broadcast %78 : i32 to vector<8x16xi32>
    %80 = arith.addi %79, %76 : vector<8x16xi32>
    %c16_i32_9 = arith.constant 16 : i32
    %81 = vector.broadcast %c16_i32_9 : i32 to vector<8x16xi32>
    %82 = arith.muli %80, %81 : vector<8x16xi32>
    %83 = arith.addi %82, %77 : vector<8x16xi32>
    %c0_10 = arith.constant 0 : index
    %84 = memref.load %arg2[%c0_10] : memref<1xi32, #tpu.memory_space<smem>>
    %c12_i32 = arith.constant 12 : i32
    %85 = vector.broadcast %c12_i32 : i32 to vector<8x16xi32>
    %86 = arith.muli %83, %85 : vector<8x16xi32>
    %c-1640531527_i32 = arith.constant -1640531527 : i32
    %87 = arith.addi %84, %c-1640531527_i32 : i32
    %c16_i32_11 = arith.constant 16 : i32
    %88 = arith.shrui %87, %c16_i32_11 : i32
    %89 = arith.xori %87, %88 : i32
    %c2146121005_i32 = arith.constant 2146121005 : i32
    %90 = arith.muli %89, %c2146121005_i32 : i32
    %c15_i32 = arith.constant 15 : i32
    %91 = arith.shrui %90, %c15_i32 : i32
    %92 = arith.xori %90, %91 : i32
    %c-2073254261_i32 = arith.constant -2073254261 : i32
    %93 = arith.muli %92, %c-2073254261_i32 : i32
    %c16_i32_12 = arith.constant 16 : i32
    %94 = arith.shrui %93, %c16_i32_12 : i32
    %95 = arith.xori %93, %94 : i32
    %cst_13 = arith.constant 0.000000e+00 : f32
    %96 = vector.broadcast %cst_13 : f32 to vector<8x16xf32>
    %c0_i32_14 = arith.constant 0 : i32
    %97 = vector.broadcast %c0_i32_14 : i32 to vector<8x16xi32>
    %98 = arith.addi %86, %97 : vector<8x16xi32>
    %99 = vector.broadcast %95 : i32 to vector<8x16xi32>
    %100 = arith.xori %98, %99 : vector<8x16xi32>
    %c16_i32_15 = arith.constant 16 : i32
    %101 = vector.broadcast %c16_i32_15 : i32 to vector<8x16xi32>
    %102 = arith.shrui %100, %101 : vector<8x16xi32>
    %103 = arith.xori %100, %102 : vector<8x16xi32>
    %c2146121005_i32_16 = arith.constant 2146121005 : i32
    %104 = vector.broadcast %c2146121005_i32_16 : i32 to vector<8x16xi32>
    %105 = arith.muli %103, %104 : vector<8x16xi32>
    %c15_i32_17 = arith.constant 15 : i32
    %106 = vector.broadcast %c15_i32_17 : i32 to vector<8x16xi32>
    %107 = arith.shrui %105, %106 : vector<8x16xi32>
    %108 = arith.xori %105, %107 : vector<8x16xi32>
    %c-2073254261_i32_18 = arith.constant -2073254261 : i32
    %109 = vector.broadcast %c-2073254261_i32_18 : i32 to vector<8x16xi32>
    %110 = arith.muli %108, %109 : vector<8x16xi32>
    %c16_i32_19 = arith.constant 16 : i32
    %111 = vector.broadcast %c16_i32_19 : i32 to vector<8x16xi32>
    %112 = arith.shrui %110, %111 : vector<8x16xi32>
    %113 = arith.xori %110, %112 : vector<8x16xi32>
    %c8_i32_20 = arith.constant 8 : i32
    %114 = vector.broadcast %c8_i32_20 : i32 to vector<8x16xi32>
    %115 = arith.shrui %113, %114 : vector<8x16xi32>
    %116 = arith.sitofp %115 : vector<8x16xi32> to vector<8x16xf32>
    %cst_21 = arith.constant 5.96046448E-8 : f32
    %117 = vector.broadcast %cst_21 : f32 to vector<8x16xf32>
    %118 = arith.mulf %116, %117 : vector<8x16xf32>
    %119 = arith.addf %96, %118 : vector<8x16xf32>
    %c1_i32_22 = arith.constant 1 : i32
    %120 = vector.broadcast %c1_i32_22 : i32 to vector<8x16xi32>
    %121 = arith.addi %86, %120 : vector<8x16xi32>
    %122 = vector.broadcast %95 : i32 to vector<8x16xi32>
    %123 = arith.xori %121, %122 : vector<8x16xi32>
    %c16_i32_23 = arith.constant 16 : i32
    %124 = vector.broadcast %c16_i32_23 : i32 to vector<8x16xi32>
    %125 = arith.shrui %123, %124 : vector<8x16xi32>
    %126 = arith.xori %123, %125 : vector<8x16xi32>
    %c2146121005_i32_24 = arith.constant 2146121005 : i32
    %127 = vector.broadcast %c2146121005_i32_24 : i32 to vector<8x16xi32>
    %128 = arith.muli %126, %127 : vector<8x16xi32>
    %c15_i32_25 = arith.constant 15 : i32
    %129 = vector.broadcast %c15_i32_25 : i32 to vector<8x16xi32>
    %130 = arith.shrui %128, %129 : vector<8x16xi32>
    %131 = arith.xori %128, %130 : vector<8x16xi32>
    %c-2073254261_i32_26 = arith.constant -2073254261 : i32
    %132 = vector.broadcast %c-2073254261_i32_26 : i32 to vector<8x16xi32>
    %133 = arith.muli %131, %132 : vector<8x16xi32>
    %c16_i32_27 = arith.constant 16 : i32
    %134 = vector.broadcast %c16_i32_27 : i32 to vector<8x16xi32>
    %135 = arith.shrui %133, %134 : vector<8x16xi32>
    %136 = arith.xori %133, %135 : vector<8x16xi32>
    %c8_i32_28 = arith.constant 8 : i32
    %137 = vector.broadcast %c8_i32_28 : i32 to vector<8x16xi32>
    %138 = arith.shrui %136, %137 : vector<8x16xi32>
    %139 = arith.sitofp %138 : vector<8x16xi32> to vector<8x16xf32>
    %cst_29 = arith.constant 5.96046448E-8 : f32
    %140 = vector.broadcast %cst_29 : f32 to vector<8x16xf32>
    %141 = arith.mulf %139, %140 : vector<8x16xf32>
    %142 = arith.addf %119, %141 : vector<8x16xf32>
    %c2_i32_30 = arith.constant 2 : i32
    %143 = vector.broadcast %c2_i32_30 : i32 to vector<8x16xi32>
    %144 = arith.addi %86, %143 : vector<8x16xi32>
    %145 = vector.broadcast %95 : i32 to vector<8x16xi32>
    %146 = arith.xori %144, %145 : vector<8x16xi32>
    %c16_i32_31 = arith.constant 16 : i32
    %147 = vector.broadcast %c16_i32_31 : i32 to vector<8x16xi32>
    %148 = arith.shrui %146, %147 : vector<8x16xi32>
    %149 = arith.xori %146, %148 : vector<8x16xi32>
    %c2146121005_i32_32 = arith.constant 2146121005 : i32
    %150 = vector.broadcast %c2146121005_i32_32 : i32 to vector<8x16xi32>
    %151 = arith.muli %149, %150 : vector<8x16xi32>
    %c15_i32_33 = arith.constant 15 : i32
    %152 = vector.broadcast %c15_i32_33 : i32 to vector<8x16xi32>
    %153 = arith.shrui %151, %152 : vector<8x16xi32>
    %154 = arith.xori %151, %153 : vector<8x16xi32>
    %c-2073254261_i32_34 = arith.constant -2073254261 : i32
    %155 = vector.broadcast %c-2073254261_i32_34 : i32 to vector<8x16xi32>
    %156 = arith.muli %154, %155 : vector<8x16xi32>
    %c16_i32_35 = arith.constant 16 : i32
    %157 = vector.broadcast %c16_i32_35 : i32 to vector<8x16xi32>
    %158 = arith.shrui %156, %157 : vector<8x16xi32>
    %159 = arith.xori %156, %158 : vector<8x16xi32>
    %c8_i32_36 = arith.constant 8 : i32
    %160 = vector.broadcast %c8_i32_36 : i32 to vector<8x16xi32>
    %161 = arith.shrui %159, %160 : vector<8x16xi32>
    %162 = arith.sitofp %161 : vector<8x16xi32> to vector<8x16xf32>
    %cst_37 = arith.constant 5.96046448E-8 : f32
    %163 = vector.broadcast %cst_37 : f32 to vector<8x16xf32>
    %164 = arith.mulf %162, %163 : vector<8x16xf32>
    %165 = arith.addf %142, %164 : vector<8x16xf32>
    %c3_i32 = arith.constant 3 : i32
    %166 = vector.broadcast %c3_i32 : i32 to vector<8x16xi32>
    %167 = arith.addi %86, %166 : vector<8x16xi32>
    %168 = vector.broadcast %95 : i32 to vector<8x16xi32>
    %169 = arith.xori %167, %168 : vector<8x16xi32>
    %c16_i32_38 = arith.constant 16 : i32
    %170 = vector.broadcast %c16_i32_38 : i32 to vector<8x16xi32>
    %171 = arith.shrui %169, %170 : vector<8x16xi32>
    %172 = arith.xori %169, %171 : vector<8x16xi32>
    %c2146121005_i32_39 = arith.constant 2146121005 : i32
    %173 = vector.broadcast %c2146121005_i32_39 : i32 to vector<8x16xi32>
    %174 = arith.muli %172, %173 : vector<8x16xi32>
    %c15_i32_40 = arith.constant 15 : i32
    %175 = vector.broadcast %c15_i32_40 : i32 to vector<8x16xi32>
    %176 = arith.shrui %174, %175 : vector<8x16xi32>
    %177 = arith.xori %174, %176 : vector<8x16xi32>
    %c-2073254261_i32_41 = arith.constant -2073254261 : i32
    %178 = vector.broadcast %c-2073254261_i32_41 : i32 to vector<8x16xi32>
    %179 = arith.muli %177, %178 : vector<8x16xi32>
    %c16_i32_42 = arith.constant 16 : i32
    %180 = vector.broadcast %c16_i32_42 : i32 to vector<8x16xi32>
    %181 = arith.shrui %179, %180 : vector<8x16xi32>
    %182 = arith.xori %179, %181 : vector<8x16xi32>
    %c8_i32_43 = arith.constant 8 : i32
    %183 = vector.broadcast %c8_i32_43 : i32 to vector<8x16xi32>
    %184 = arith.shrui %182, %183 : vector<8x16xi32>
    %185 = arith.sitofp %184 : vector<8x16xi32> to vector<8x16xf32>
    %cst_44 = arith.constant 5.96046448E-8 : f32
    %186 = vector.broadcast %cst_44 : f32 to vector<8x16xf32>
    %187 = arith.mulf %185, %186 : vector<8x16xf32>
    %188 = arith.addf %165, %187 : vector<8x16xf32>
    %c4_i32 = arith.constant 4 : i32
    %189 = vector.broadcast %c4_i32 : i32 to vector<8x16xi32>
    %190 = arith.addi %86, %189 : vector<8x16xi32>
    %191 = vector.broadcast %95 : i32 to vector<8x16xi32>
    %192 = arith.xori %190, %191 : vector<8x16xi32>
    %c16_i32_45 = arith.constant 16 : i32
    %193 = vector.broadcast %c16_i32_45 : i32 to vector<8x16xi32>
    %194 = arith.shrui %192, %193 : vector<8x16xi32>
    %195 = arith.xori %192, %194 : vector<8x16xi32>
    %c2146121005_i32_46 = arith.constant 2146121005 : i32
    %196 = vector.broadcast %c2146121005_i32_46 : i32 to vector<8x16xi32>
    %197 = arith.muli %195, %196 : vector<8x16xi32>
    %c15_i32_47 = arith.constant 15 : i32
    %198 = vector.broadcast %c15_i32_47 : i32 to vector<8x16xi32>
    %199 = arith.shrui %197, %198 : vector<8x16xi32>
    %200 = arith.xori %197, %199 : vector<8x16xi32>
    %c-2073254261_i32_48 = arith.constant -2073254261 : i32
    %201 = vector.broadcast %c-2073254261_i32_48 : i32 to vector<8x16xi32>
    %202 = arith.muli %200, %201 : vector<8x16xi32>
    %c16_i32_49 = arith.constant 16 : i32
    %203 = vector.broadcast %c16_i32_49 : i32 to vector<8x16xi32>
    %204 = arith.shrui %202, %203 : vector<8x16xi32>
    %205 = arith.xori %202, %204 : vector<8x16xi32>
    %c8_i32_50 = arith.constant 8 : i32
    %206 = vector.broadcast %c8_i32_50 : i32 to vector<8x16xi32>
    %207 = arith.shrui %205, %206 : vector<8x16xi32>
    %208 = arith.sitofp %207 : vector<8x16xi32> to vector<8x16xf32>
    %cst_51 = arith.constant 5.96046448E-8 : f32
    %209 = vector.broadcast %cst_51 : f32 to vector<8x16xf32>
    %210 = arith.mulf %208, %209 : vector<8x16xf32>
    %211 = arith.addf %188, %210 : vector<8x16xf32>
    %c5_i32 = arith.constant 5 : i32
    %212 = vector.broadcast %c5_i32 : i32 to vector<8x16xi32>
    %213 = arith.addi %86, %212 : vector<8x16xi32>
    %214 = vector.broadcast %95 : i32 to vector<8x16xi32>
    %215 = arith.xori %213, %214 : vector<8x16xi32>
    %c16_i32_52 = arith.constant 16 : i32
    %216 = vector.broadcast %c16_i32_52 : i32 to vector<8x16xi32>
    %217 = arith.shrui %215, %216 : vector<8x16xi32>
    %218 = arith.xori %215, %217 : vector<8x16xi32>
    %c2146121005_i32_53 = arith.constant 2146121005 : i32
    %219 = vector.broadcast %c2146121005_i32_53 : i32 to vector<8x16xi32>
    %220 = arith.muli %218, %219 : vector<8x16xi32>
    %c15_i32_54 = arith.constant 15 : i32
    %221 = vector.broadcast %c15_i32_54 : i32 to vector<8x16xi32>
    %222 = arith.shrui %220, %221 : vector<8x16xi32>
    %223 = arith.xori %220, %222 : vector<8x16xi32>
    %c-2073254261_i32_55 = arith.constant -2073254261 : i32
    %224 = vector.broadcast %c-2073254261_i32_55 : i32 to vector<8x16xi32>
    %225 = arith.muli %223, %224 : vector<8x16xi32>
    %c16_i32_56 = arith.constant 16 : i32
    %226 = vector.broadcast %c16_i32_56 : i32 to vector<8x16xi32>
    %227 = arith.shrui %225, %226 : vector<8x16xi32>
    %228 = arith.xori %225, %227 : vector<8x16xi32>
    %c8_i32_57 = arith.constant 8 : i32
    %229 = vector.broadcast %c8_i32_57 : i32 to vector<8x16xi32>
    %230 = arith.shrui %228, %229 : vector<8x16xi32>
    %231 = arith.sitofp %230 : vector<8x16xi32> to vector<8x16xf32>
    %cst_58 = arith.constant 5.96046448E-8 : f32
    %232 = vector.broadcast %cst_58 : f32 to vector<8x16xf32>
    %233 = arith.mulf %231, %232 : vector<8x16xf32>
    %234 = arith.addf %211, %233 : vector<8x16xf32>
    %c6_i32 = arith.constant 6 : i32
    %235 = vector.broadcast %c6_i32 : i32 to vector<8x16xi32>
    %236 = arith.addi %86, %235 : vector<8x16xi32>
    %237 = vector.broadcast %95 : i32 to vector<8x16xi32>
    %238 = arith.xori %236, %237 : vector<8x16xi32>
    %c16_i32_59 = arith.constant 16 : i32
    %239 = vector.broadcast %c16_i32_59 : i32 to vector<8x16xi32>
    %240 = arith.shrui %238, %239 : vector<8x16xi32>
    %241 = arith.xori %238, %240 : vector<8x16xi32>
    %c2146121005_i32_60 = arith.constant 2146121005 : i32
    %242 = vector.broadcast %c2146121005_i32_60 : i32 to vector<8x16xi32>
    %243 = arith.muli %241, %242 : vector<8x16xi32>
    %c15_i32_61 = arith.constant 15 : i32
    %244 = vector.broadcast %c15_i32_61 : i32 to vector<8x16xi32>
    %245 = arith.shrui %243, %244 : vector<8x16xi32>
    %246 = arith.xori %243, %245 : vector<8x16xi32>
    %c-2073254261_i32_62 = arith.constant -2073254261 : i32
    %247 = vector.broadcast %c-2073254261_i32_62 : i32 to vector<8x16xi32>
    %248 = arith.muli %246, %247 : vector<8x16xi32>
    %c16_i32_63 = arith.constant 16 : i32
    %249 = vector.broadcast %c16_i32_63 : i32 to vector<8x16xi32>
    %250 = arith.shrui %248, %249 : vector<8x16xi32>
    %251 = arith.xori %248, %250 : vector<8x16xi32>
    %c8_i32_64 = arith.constant 8 : i32
    %252 = vector.broadcast %c8_i32_64 : i32 to vector<8x16xi32>
    %253 = arith.shrui %251, %252 : vector<8x16xi32>
    %254 = arith.sitofp %253 : vector<8x16xi32> to vector<8x16xf32>
    %cst_65 = arith.constant 5.96046448E-8 : f32
    %255 = vector.broadcast %cst_65 : f32 to vector<8x16xf32>
    %256 = arith.mulf %254, %255 : vector<8x16xf32>
    %257 = arith.addf %234, %256 : vector<8x16xf32>
    %c7_i32 = arith.constant 7 : i32
    %258 = vector.broadcast %c7_i32 : i32 to vector<8x16xi32>
    %259 = arith.addi %86, %258 : vector<8x16xi32>
    %260 = vector.broadcast %95 : i32 to vector<8x16xi32>
    %261 = arith.xori %259, %260 : vector<8x16xi32>
    %c16_i32_66 = arith.constant 16 : i32
    %262 = vector.broadcast %c16_i32_66 : i32 to vector<8x16xi32>
    %263 = arith.shrui %261, %262 : vector<8x16xi32>
    %264 = arith.xori %261, %263 : vector<8x16xi32>
    %c2146121005_i32_67 = arith.constant 2146121005 : i32
    %265 = vector.broadcast %c2146121005_i32_67 : i32 to vector<8x16xi32>
    %266 = arith.muli %264, %265 : vector<8x16xi32>
    %c15_i32_68 = arith.constant 15 : i32
    %267 = vector.broadcast %c15_i32_68 : i32 to vector<8x16xi32>
    %268 = arith.shrui %266, %267 : vector<8x16xi32>
    %269 = arith.xori %266, %268 : vector<8x16xi32>
    %c-2073254261_i32_69 = arith.constant -2073254261 : i32
    %270 = vector.broadcast %c-2073254261_i32_69 : i32 to vector<8x16xi32>
    %271 = arith.muli %269, %270 : vector<8x16xi32>
    %c16_i32_70 = arith.constant 16 : i32
    %272 = vector.broadcast %c16_i32_70 : i32 to vector<8x16xi32>
    %273 = arith.shrui %271, %272 : vector<8x16xi32>
    %274 = arith.xori %271, %273 : vector<8x16xi32>
    %c8_i32_71 = arith.constant 8 : i32
    %275 = vector.broadcast %c8_i32_71 : i32 to vector<8x16xi32>
    %276 = arith.shrui %274, %275 : vector<8x16xi32>
    %277 = arith.sitofp %276 : vector<8x16xi32> to vector<8x16xf32>
    %cst_72 = arith.constant 5.96046448E-8 : f32
    %278 = vector.broadcast %cst_72 : f32 to vector<8x16xf32>
    %279 = arith.mulf %277, %278 : vector<8x16xf32>
    %280 = arith.addf %257, %279 : vector<8x16xf32>
    %c8_i32_73 = arith.constant 8 : i32
    %281 = vector.broadcast %c8_i32_73 : i32 to vector<8x16xi32>
    %282 = arith.addi %86, %281 : vector<8x16xi32>
    %283 = vector.broadcast %95 : i32 to vector<8x16xi32>
    %284 = arith.xori %282, %283 : vector<8x16xi32>
    %c16_i32_74 = arith.constant 16 : i32
    %285 = vector.broadcast %c16_i32_74 : i32 to vector<8x16xi32>
    %286 = arith.shrui %284, %285 : vector<8x16xi32>
    %287 = arith.xori %284, %286 : vector<8x16xi32>
    %c2146121005_i32_75 = arith.constant 2146121005 : i32
    %288 = vector.broadcast %c2146121005_i32_75 : i32 to vector<8x16xi32>
    %289 = arith.muli %287, %288 : vector<8x16xi32>
    %c15_i32_76 = arith.constant 15 : i32
    %290 = vector.broadcast %c15_i32_76 : i32 to vector<8x16xi32>
    %291 = arith.shrui %289, %290 : vector<8x16xi32>
    %292 = arith.xori %289, %291 : vector<8x16xi32>
    %c-2073254261_i32_77 = arith.constant -2073254261 : i32
    %293 = vector.broadcast %c-2073254261_i32_77 : i32 to vector<8x16xi32>
    %294 = arith.muli %292, %293 : vector<8x16xi32>
    %c16_i32_78 = arith.constant 16 : i32
    %295 = vector.broadcast %c16_i32_78 : i32 to vector<8x16xi32>
    %296 = arith.shrui %294, %295 : vector<8x16xi32>
    %297 = arith.xori %294, %296 : vector<8x16xi32>
    %c8_i32_79 = arith.constant 8 : i32
    %298 = vector.broadcast %c8_i32_79 : i32 to vector<8x16xi32>
    %299 = arith.shrui %297, %298 : vector<8x16xi32>
    %300 = arith.sitofp %299 : vector<8x16xi32> to vector<8x16xf32>
    %cst_80 = arith.constant 5.96046448E-8 : f32
    %301 = vector.broadcast %cst_80 : f32 to vector<8x16xf32>
    %302 = arith.mulf %300, %301 : vector<8x16xf32>
    %303 = arith.addf %280, %302 : vector<8x16xf32>
    %c9_i32 = arith.constant 9 : i32
    %304 = vector.broadcast %c9_i32 : i32 to vector<8x16xi32>
    %305 = arith.addi %86, %304 : vector<8x16xi32>
    %306 = vector.broadcast %95 : i32 to vector<8x16xi32>
    %307 = arith.xori %305, %306 : vector<8x16xi32>
    %c16_i32_81 = arith.constant 16 : i32
    %308 = vector.broadcast %c16_i32_81 : i32 to vector<8x16xi32>
    %309 = arith.shrui %307, %308 : vector<8x16xi32>
    %310 = arith.xori %307, %309 : vector<8x16xi32>
    %c2146121005_i32_82 = arith.constant 2146121005 : i32
    %311 = vector.broadcast %c2146121005_i32_82 : i32 to vector<8x16xi32>
    %312 = arith.muli %310, %311 : vector<8x16xi32>
    %c15_i32_83 = arith.constant 15 : i32
    %313 = vector.broadcast %c15_i32_83 : i32 to vector<8x16xi32>
    %314 = arith.shrui %312, %313 : vector<8x16xi32>
    %315 = arith.xori %312, %314 : vector<8x16xi32>
    %c-2073254261_i32_84 = arith.constant -2073254261 : i32
    %316 = vector.broadcast %c-2073254261_i32_84 : i32 to vector<8x16xi32>
    %317 = arith.muli %315, %316 : vector<8x16xi32>
    %c16_i32_85 = arith.constant 16 : i32
    %318 = vector.broadcast %c16_i32_85 : i32 to vector<8x16xi32>
    %319 = arith.shrui %317, %318 : vector<8x16xi32>
    %320 = arith.xori %317, %319 : vector<8x16xi32>
    %c8_i32_86 = arith.constant 8 : i32
    %321 = vector.broadcast %c8_i32_86 : i32 to vector<8x16xi32>
    %322 = arith.shrui %320, %321 : vector<8x16xi32>
    %323 = arith.sitofp %322 : vector<8x16xi32> to vector<8x16xf32>
    %cst_87 = arith.constant 5.96046448E-8 : f32
    %324 = vector.broadcast %cst_87 : f32 to vector<8x16xf32>
    %325 = arith.mulf %323, %324 : vector<8x16xf32>
    %326 = arith.addf %303, %325 : vector<8x16xf32>
    %c10_i32 = arith.constant 10 : i32
    %327 = vector.broadcast %c10_i32 : i32 to vector<8x16xi32>
    %328 = arith.addi %86, %327 : vector<8x16xi32>
    %329 = vector.broadcast %95 : i32 to vector<8x16xi32>
    %330 = arith.xori %328, %329 : vector<8x16xi32>
    %c16_i32_88 = arith.constant 16 : i32
    %331 = vector.broadcast %c16_i32_88 : i32 to vector<8x16xi32>
    %332 = arith.shrui %330, %331 : vector<8x16xi32>
    %333 = arith.xori %330, %332 : vector<8x16xi32>
    %c2146121005_i32_89 = arith.constant 2146121005 : i32
    %334 = vector.broadcast %c2146121005_i32_89 : i32 to vector<8x16xi32>
    %335 = arith.muli %333, %334 : vector<8x16xi32>
    %c15_i32_90 = arith.constant 15 : i32
    %336 = vector.broadcast %c15_i32_90 : i32 to vector<8x16xi32>
    %337 = arith.shrui %335, %336 : vector<8x16xi32>
    %338 = arith.xori %335, %337 : vector<8x16xi32>
    %c-2073254261_i32_91 = arith.constant -2073254261 : i32
    %339 = vector.broadcast %c-2073254261_i32_91 : i32 to vector<8x16xi32>
    %340 = arith.muli %338, %339 : vector<8x16xi32>
    %c16_i32_92 = arith.constant 16 : i32
    %341 = vector.broadcast %c16_i32_92 : i32 to vector<8x16xi32>
    %342 = arith.shrui %340, %341 : vector<8x16xi32>
    %343 = arith.xori %340, %342 : vector<8x16xi32>
    %c8_i32_93 = arith.constant 8 : i32
    %344 = vector.broadcast %c8_i32_93 : i32 to vector<8x16xi32>
    %345 = arith.shrui %343, %344 : vector<8x16xi32>
    %346 = arith.sitofp %345 : vector<8x16xi32> to vector<8x16xf32>
    %cst_94 = arith.constant 5.96046448E-8 : f32
    %347 = vector.broadcast %cst_94 : f32 to vector<8x16xf32>
    %348 = arith.mulf %346, %347 : vector<8x16xf32>
    %349 = arith.addf %326, %348 : vector<8x16xf32>
    %c11_i32 = arith.constant 11 : i32
    %350 = vector.broadcast %c11_i32 : i32 to vector<8x16xi32>
    %351 = arith.addi %86, %350 : vector<8x16xi32>
    %352 = vector.broadcast %95 : i32 to vector<8x16xi32>
    %353 = arith.xori %351, %352 : vector<8x16xi32>
    %c16_i32_95 = arith.constant 16 : i32
    %354 = vector.broadcast %c16_i32_95 : i32 to vector<8x16xi32>
    %355 = arith.shrui %353, %354 : vector<8x16xi32>
    %356 = arith.xori %353, %355 : vector<8x16xi32>
    %c2146121005_i32_96 = arith.constant 2146121005 : i32
    %357 = vector.broadcast %c2146121005_i32_96 : i32 to vector<8x16xi32>
    %358 = arith.muli %356, %357 : vector<8x16xi32>
    %c15_i32_97 = arith.constant 15 : i32
    %359 = vector.broadcast %c15_i32_97 : i32 to vector<8x16xi32>
    %360 = arith.shrui %358, %359 : vector<8x16xi32>
    %361 = arith.xori %358, %360 : vector<8x16xi32>
    %c-2073254261_i32_98 = arith.constant -2073254261 : i32
    %362 = vector.broadcast %c-2073254261_i32_98 : i32 to vector<8x16xi32>
    %363 = arith.muli %361, %362 : vector<8x16xi32>
    %c16_i32_99 = arith.constant 16 : i32
    %364 = vector.broadcast %c16_i32_99 : i32 to vector<8x16xi32>
    %365 = arith.shrui %363, %364 : vector<8x16xi32>
    %366 = arith.xori %363, %365 : vector<8x16xi32>
    %c8_i32_100 = arith.constant 8 : i32
    %367 = vector.broadcast %c8_i32_100 : i32 to vector<8x16xi32>
    %368 = arith.shrui %366, %367 : vector<8x16xi32>
    %369 = arith.sitofp %368 : vector<8x16xi32> to vector<8x16xf32>
    %cst_101 = arith.constant 5.96046448E-8 : f32
    %370 = vector.broadcast %cst_101 : f32 to vector<8x16xf32>
    %371 = arith.mulf %369, %370 : vector<8x16xf32>
    %372 = arith.addf %349, %371 : vector<8x16xf32>
    %cst_102 = arith.constant 6.000000e+00 : f32
    %373 = vector.broadcast %cst_102 : f32 to vector<8x16xf32>
    %374 = arith.subf %372, %373 : vector<8x16xf32>
    %cst_103 = arith.constant 1.000000e-01 : f32
    %375 = vector.broadcast %cst_103 : f32 to vector<8x16xf32>
    %376 = arith.mulf %375, %374 : vector<8x16xf32>
    %377 = arith.addf %72, %376 : vector<8x16xf32>
    %c0_104 = arith.constant 0 : index
    %c0_105 = arith.constant 0 : index
    %c0_106 = arith.constant 0 : index
    %378 = vector.load %arg5[%c0_104, %c0_105, %c0_106] : memref<1x8x16xf32, #tpu.memory_space<vmem>>, vector<1x8x16xf32>
    %379 = vector.shape_cast %378 : vector<1x8x16xf32> to vector<8x16xf32>
    %380 = vector.shape_cast %377 : vector<8x16xf32> to vector<1x8x16xf32>
    tpu.vector_store %arg5[%c0_104, %c0_105, %c0_106], %380 {strides = array<i32>} : memref<1x8x16xf32, #tpu.memory_space<vmem>>, vector<1x8x16xf32>,
    return
  }
  func.func @transform_0(%arg0: i32, %arg1: i32) -> i32 {
    %c0_i32 = arith.constant 0 : i32
    %c0_i32_0 = arith.constant 0 : i32
    return %c0_i32 : i32
  }
  func.func @transform_1(%arg0: i32, %arg1: i32) -> (i32, i32) {
    %c0_i32 = arith.constant 0 : i32
    %c0_i32_0 = arith.constant 0 : i32
    %c0_i32_1 = arith.constant 0 : i32
    return %c0_i32, %c0_i32_0 : i32, i32
  }
  func.func @transform_2(%arg0: i32, %arg1: i32) -> (i32, i32, i32) {
    %c0_i32 = arith.constant 0 : i32
    %c0_i32_0 = arith.constant 0 : i32
    %c0_i32_1 = arith.constant 0 : i32
    return %arg0, %c0_i32, %c0_i32_0 : i32, i32, i32
  }
  func.func @transform_3(%arg0: i32, %arg1: i32) -> (i32, i32, i32) {
    %c0_i32 = arith.constant 0 : i32
    %c0_i32_0 = arith.constant 0 : i32
    return %arg0, %arg1, %c0_i32 : i32, i32, i32
  }
}

</mosaic_0001>

<llo_original>
// kernel: tpu_custom_call.1
$region0: #{tpu_custom_call.1}
  #allocation0 [shape = 'u32[]', space=smem, size = 0x4, offset = 0x4, fixed_abs, tag = 'smem constant byte address 0x4 - core index']
  #allocation1 [shape = 'u32[144,128]{1,0:T(1,128)}', space=vmem, size = 0x12000, scoped, tag = 'internal scratch']
  #allocation2 [shape = 's32[1]{0:T(128)S(6)}', space=smem, size = 0x200, scoped, tag = 'scoped memory for tpu_custom_call.1']
  %s0 = inlined_call_operand.<no memory space> [shape: s32[1], index: 0, kind: input, shape index: {}]
  %s1 = inlined_call_operand.vmem [shape: f32[8,9], index: 1, kind: input, shape index: {}]
  %s2 = inlined_call_operand.vmem [shape: f32[8,18,18], index: 2, kind: input, shape index: {}]
  %s3 = inlined_call_operand.hbm [shape: f32[8,16,16], index: 3, kind: output, shape index: {}]
  %s4 = sld [smem:[#allocation0]]
  $region49: #{tpu_custom_call.1} parent=0
    _
  %s6 = ssub.s32 1, %s4
  %s7 = scalar_select 0, %s6, %s4
  %8 = sst [smem:[#allocation2]] %s0
  $region1: #{tpu_custom_call.1} parent=0
    #allocation3 [shape = 'u8[4096]{0}', space=smem, size = 0x1000, scoped, tag = 'input window, operand 1, single buffered']
    #allocation4 [shape = 's32[2]{0}', space=sflag, size = 0x8, scoped, tag = 'scoped memory for tpu_custom_call.1']
    #allocation5 [shape = 's32[2]{0}', space=sflag, size = 0x8, scoped, tag = 'scoped memory for tpu_custom_call.1']
    #allocation6 [shape = 'u8[8192]{0}', space=vmem, size = 0x2000, scoped, tag = 'output window, operand 0']
    %9 = vsyncpa [#allocation5], 0
    %10 = vsyncpa [#allocation4], 0
    %s11 = scalar_lea.sflag [#allocation4], 1
    %12 = vsyncpa %s11, 0
    loop: start=0, step=1, limit=18
    $region2: #{tpu_custom_call.1} parent=1 // loop_pre_header
      _
    $region3: #{tpu_custom_call.1} parent=1 // loop_header
      %s14 = sphi 0, %s18
      %p15 = scmp.ge.s32.totalorder %s14, 18
      %s21 = sphi 0, %s33
      %s22 = sphi 0, %s29
      %s23 = sphi 0, %s21
      %s24 = sphi 0, %s22
      %s25 = sphi 0, %s23
      %s26 = sphi 0, %s24
      %s34 = sphi 0, %s34
      %s36 = sphi 0, %s34
      %s37 = sphi 0, %s36
      %s51 = sphi 0, %s37
      %s55 = sphi 0, %s55
      %s57 = sphi 0, %s55
      %s58 = sphi 0, %s57
      %s72 = sphi 0, %s58
      %s78 = sphi 0, %s80
      %s81 = sphi 0, %s78
      %s82 = sphi 0, %s81
      %s98 = sphi 0, %s82
      %s106 = sphi 0, %s108
      %s109 = sphi 0, %s106
      %s110 = sphi 0, %s109
      %s126 = sphi 0, %s110
    $region4: #{tpu_custom_call.1} parent=1 // loop_header_branch
      %17 = sbr.rel (%p15) target = $region8
    $region5: #{tpu_custom_call.1} parent=1 // loop_body
      %s19 = ssub.s32 %s14, 1
      %s20 = ssub.s32 %s14, 2
      %s27 = sadd.s32 1, %s22
      %p28 = scmp.ge.s32.totalorder %s27, 2
      %s29 = scalar_select %p28, 0, %s27
      %s30 = sadd.s32 1, %s21
      %s31 = scalar_select %p28, %s30, %s21
      %p32 = scmp.ge.s32.totalorder %s31, 8
      %s33 = scalar_select %p32, 0, %s31
      %s35 = sadd.s32 %s34, 1
      %p38 = scmp.eq.s32.totalorder %s14, 15
      %p39 = scmp.ne.s32.totalorder %s34, %s36
      %p40 = scmp.eq.s32.totalorder %s14, 0
      %p41 = por %p39, %p40
      %p42 = scmp.ne.s32.totalorder %s34, %s36
      %p43 = scmp.eq.s32.totalorder %s19, 15
      %p44 = por %p42, %p43
      %p45 = scmp.ne.s32.totalorder %s36, %s37
      %p46 = scmp.eq.s32.totalorder %s19, 0
      %p47 = por %p45, %p46
      %p48 = scmp.ne.s32.totalorder %s36, %s37
      %p49 = scmp.eq.s32.totalorder %s20, 15
      %p50 = por %p48, %p49
      %p52 = scmp.ne.s32.totalorder %s37, %s51
      %p53 = scmp.eq.s32.totalorder %s20, 0
      %p54 = por %p52, %p53
      %s56 = sadd.s32 %s55, 1
      %p59 = scmp.eq.s32.totalorder %s14, 15
      %p60 = scmp.ne.s32.totalorder %s55, %s57
      %p61 = scmp.eq.s32.totalorder %s14, 0
      %p62 = por %p60, %p61
      %p63 = scmp.ne.s32.totalorder %s55, %s57
      %p64 = scmp.eq.s32.totalorder %s19, 15
      %p65 = por %p63, %p64
      %p66 = scmp.ne.s32.totalorder %s57, %s58
      %p67 = scmp.eq.s32.totalorder %s19, 0
      %p68 = por %p66, %p67
      %p69 = scmp.ne.s32.totalorder %s57, %s58
      %p70 = scmp.eq.s32.totalorder %s20, 15
      %p71 = por %p69, %p70
      %p73 = scmp.ne.s32.totalorder %s58, %s72
      %p74 = scmp.eq.s32.totalorder %s20, 0
      %p75 = por %p73, %p74
      %s76 = ssub.s32 %s21, %s33
      %p77 = scmp.eq.s32.totalorder %s76, 0
      %s79 = sadd.s32 %s78, 1
      %s80 = scalar_select %p77, %s78, %s79
      %p83 = pneg %p77
      %p84 = scmp.eq.s32.totalorder %s14, 15
      %p85 = por %p83, %p84
      %p86 = scmp.ne.s32.totalorder %s78, %s81
      %p87 = scmp.eq.s32.totalorder %s14, 0
      %p88 = por %p86, %p87
      %p89 = scmp.ne.s32.totalorder %s78, %s81
      %p90 = scmp.eq.s32.totalorder %s19, 15
      %p91 = por %p89, %p90
      %p92 = scmp.ne.s32.totalorder %s81, %s82
      %p93 = scmp.eq.s32.totalorder %s19, 0
      %p94 = por %p92, %p93
      %p95 = scmp.ne.s32.totalorder %s81, %s82
      %p96 = scmp.eq.s32.totalorder %s20, 15
      %p97 = por %p95, %p96
      %p99 = scmp.ne.s32.totalorder %s82, %s98
      %p100 = scmp.eq.s32.totalorder %s20, 0
      %p101 = por %p99, %p100
      %s102 = ssub.s32 %s21, %s33
      %s103 = ssub.s32 %s22, %s29
      %s104 = sor.u32 %s102, %s103
      %p105 = scmp.eq.s32.totalorder %s104, 0
      %s107 = sadd.s32 %s106, 1
      %s108 = scalar_select %p105, %s106, %s107
      %p111 = pneg %p105
      %p112 = scmp.eq.s32.totalorder %s14, 15
      %p113 = por %p111, %p112
      %p114 = scmp.ne.s32.totalorder %s106, %s109
      %p115 = scmp.eq.s32.totalorder %s14, 0
      %p116 = por %p114, %p115
      %p117 = scmp.ne.s32.totalorder %s106, %s109
      %p118 = scmp.eq.s32.totalorder %s19, 15
      %p119 = por %p117, %p118
      %p120 = scmp.ne.s32.totalorder %s109, %s110
      %p121 = scmp.eq.s32.totalorder %s19, 0
      %p122 = por %p120, %p121
      %p123 = scmp.ne.s32.totalorder %s109, %s110
      %p124 = scmp.eq.s32.totalorder %s20, 15
      %p125 = por %p123, %p124
      %p127 = scmp.ne.s32.totalorder %s110, %s126
      %p128 = scmp.eq.s32.totalorder %s20, 0
      %p129 = por %p127, %p128
      %p130 = scmp.le.s32.totalorder 1, %s14
      %p131 = scmp.lt.s32.totalorder %s14, 17
      %p132 = pnand %p130, %p131
      %p133 = pneg %p132
      // Predicated region
      $region9: #{tpu_custom_call.1} parent=5 // pred_check
        _
      $region10: #{tpu_custom_call.1} parent=5 // pred_check_branch
        %135 = sbr.rel (%p132) target = $region12
      $region11: #{tpu_custom_call.1} parent=5 // pred_region
        %s136 = ssub.s32 %s14, 1
        // Predicated region
        $region13: #{tpu_custom_call.1} parent=11 // pred_check
          %p137 = pneg %p47
        $region14: #{tpu_custom_call.1} parent=11 // pred_check_branch
          %139 = sbr.rel (%p137) target = $region16
        $region15: #{tpu_custom_call.1} parent=11 // pred_region
          _
        $region16: #{tpu_custom_call.1} parent=11 // pred_fallthru
          _
        // Predicated region
        $region17: #{tpu_custom_call.1} parent=11 // pred_check
          %p140 = pneg %p68
        $region18: #{tpu_custom_call.1} parent=11 // pred_check_branch
          %142 = sbr.rel (%p140) target = $region20
        $region19: #{tpu_custom_call.1} parent=11 // pred_region
          %s144 = ssub.s32 128, 128
          %145 = vsyncadd [#allocation5], %s144
          %s147 = sshll.u32 %s1, 4
          %s148 = int_to_ptr.vmem [resolvable:$true] %s147
          %150 = dma.vmem_to_smem %s148, 128, [#allocation3], [#allocation5]
        $region20: #{tpu_custom_call.1} parent=11 // pred_fallthru
          _
      $region12: #{tpu_custom_call.1} parent=5 // pred_fallthru
        _
      %p151 = scmp.lt.s32.totalorder %s14, 16
      // Predicated region
      $region21: #{tpu_custom_call.1} parent=5 // pred_check
        %p152 = pneg %p151
      $region22: #{tpu_custom_call.1} parent=5 // pred_check_branch
        %154 = sbr.rel (%p152) target = $region24
      $region23: #{tpu_custom_call.1} parent=5 // pred_region
        // Predicated region
        $region25: #{tpu_custom_call.1} parent=23 // pred_check
          %p155 = pneg %p88
        $region26: #{tpu_custom_call.1} parent=23 // pred_check_branch
          %157 = sbr.rel (%p155) target = $region28
        $region27: #{tpu_custom_call.1} parent=23 // pred_region
          %p158 = scmp.lt.s32.totalorder %s21, 7
          %s159 = scalar_select %p158, %s21, 7
          %s160 = smul.addr %s159, 3
          %s161 = smul.addr %s160, 8
          %s162 = scalar_lea.vmem %s2, %s161
        $region28: #{tpu_custom_call.1} parent=23 // pred_fallthru
          _
      $region24: #{tpu_custom_call.1} parent=5 // pred_fallthru
        _
      %p163 = scmp.le.s32.totalorder 1, %s14
      %p164 = scmp.lt.s32.totalorder %s14, 17
      %p165 = pnand %p163, %p164
      %p166 = pneg %p165
      // Predicated region
      $region29: #{tpu_custom_call.1} parent=5 // pred_check
        _
      $region30: #{tpu_custom_call.1} parent=5 // pred_check_branch
        %168 = sbr.rel (%p165) target = $region32
      $region31: #{tpu_custom_call.1} parent=5 // pred_region
        %s169 = ssub.s32 %s14, 1
        // Predicated region
        $region33: #{tpu_custom_call.1} parent=31 // pred_check
          %p170 = pneg %p68
        $region34: #{tpu_custom_call.1} parent=31 // pred_check_branch
          %172 = sbr.rel (%p170) target = $region36
        $region35: #{tpu_custom_call.1} parent=31 // pred_region
          %173 = dma.done [#allocation5], 128
        $region36: #{tpu_custom_call.1} parent=31 // pred_fallthru
          _
        %174 = sfence
        %p175 = pneg %p47
        %p176 = pneg %p44
        %p177 = pneg %p68
        %p178 = pneg %p65
        %p179 = scmp.lt.s32.totalorder %s23, 7
        %s180 = scalar_select %p179, %s23, 7
        %s181 = smul.addr %s180, 3
        %s182 = smul.addr %s181, 8
        %s183 = scalar_lea.vmem %s2, %s182
        %p184 = pneg %p94
        %p185 = pneg %p91
        %p186 = pneg %p122
        %p187 = pneg %p119
        %s188 = sand.u32 %s109, 1
        %s189 = scalar_lea.sflag [#allocation4], %s188
        %s190 = sand.u32 %s109, 1
        %s191 = smul.addr %s190, 8
        %s192 = scalar_lea.vmem [#allocation6], %s191
        %p193 = scmp.lt.s32.totalorder %s23, 7
        %s194 = scalar_select %p193, %s23, 7
        %s195 = smul.addr %s194, 3
        %s196 = smul.addr %s195, 8
        %s197 = scalar_lea.vmem %s2, %s196
        %s198 = smul.u32 %s24, 8
        %s199 = scalar_lea.vmem %s197, %s198
        %v200 = vld [vmem:[%s199] sm:$0xff]
        %s201 = smul.u32 %s23, 128
        %s202 = sld [smem:[#allocation3 + %s201]]
        %v203 = vstv %s202
        %v204 = vmul.f32 %v200, %v203
        %v205 = vadd.f32 %v204, 0.0
        %s206 = sadd.s32 %s201, 1
        %s207 = sld [smem:[#allocation3 + %s206]]
        %v208 = vstv %s207
        %v209 = vmul.f32 %v200, %v208
        %v210 = vadd.f32 %v209, 0.0
        %s211 = sadd.s32 %s201, 2
        %s212 = sld [smem:[#allocation3 + %s211]]
        %v213 = vstv %s212
        %v214 = vmul.f32 %v200, %v213
        %v215 = vadd.f32 %v214, 0.0
        %s216 = sadd.s32 %s198, 1
        %s217 = scalar_lea.vmem %s197, %s216
        %v218 = vld [vmem:[%s217] sm:$0xff]
        %s219 = sadd.s32 %s201, 3
        %s220 = sld [smem:[#allocation3 + %s219]]
        %v221 = vstv %s220
        %v222 = vmul.f32 %v218, %v221
        %v223 = vadd.f32 %v205, %v222
        %s224 = sadd.s32 %s201, 4
        %s225 = sld [smem:[#allocation3 + %s224]]
        %v226 = vstv %s225
        %v227 = vmul.f32 %v218, %v226
        %v228 = vadd.f32 %v210, %v227
        %s229 = sadd.s32 %s201, 5
        %s230 = sld [smem:[#allocation3 + %s229]]
        %v231 = vstv %s230
        %v232 = vmul.f32 %v218, %v231
        %v233 = vadd.f32 %v215, %v232
        %s234 = sadd.s32 %s198, 2
        %s235 = scalar_lea.vmem %s197, %s234
        %v236 = vld [vmem:[%s235] sm:$0xff]
        %s237 = sadd.s32 %s201, 6
        %s238 = sld [smem:[#allocation3 + %s237]]
        %v239 = vstv %s238
        %v240 = vmul.f32 %v236, %v239
        %v241 = vadd.f32 %v223, %v240
        %s242 = sadd.s32 %s201, 7
        %s243 = sld [smem:[#allocation3 + %s242]]
        %v244 = vstv %s243
        %v245 = vmul.f32 %v236, %v244
        %v246 = vadd.f32 %v228, %v245
        %s247 = sadd.s32 %s201, 8
        %s248 = sld [smem:[#allocation3 + %s247]]
        %v249 = vstv %s248
        %v250 = vmul.f32 %v236, %v249
        %v251 = vadd.f32 %v233, %v250
        %253 = vrot.lane.b32.xlu0 %v246, 127
        %v254 = vpop.permute.xlu0 %253
        %v256 = vadd.f32 %v241, %v254
        %258 = vrot.lane.b32.xlu0 %v251, 126
        %v259 = vpop.permute.xlu0 %258
        %v261 = vadd.f32 %v256, %v259
        %v262 = vlaneseq
        %v263 = vshrl.u32 %v262, 7
        %v264 = vstv %s198
        %v265 = vadd.s32 %v264, %v263
        %v266 = vlaneseq
        %v267 = vand.u32 %v266, 127
        %s268 = smul.u32 %s23, 16
        %v269 = vstv %s268
        %v270 = vadd.s32 %v269, %v265
        %v271 = vmul.u32 %v270, 16
        %v272 = vadd.s32 %v271, %v267
        %s273 = sld [smem:[#allocation2]]
        %v274 = vmul.u32 %v272, 12
        %s275 = sadd.s32 %s273, 2654435769
        %s276 = sshrl.u32 %s275, 16
        %s277 = sxor.u32 %s275, %s276
        %s278 = smul.u32 %s277, 2146121005
        %s279 = sshrl.u32 %s278, 15
        %s280 = sxor.u32 %s278, %s279
        %s281 = smul.u32 %s280, 2221713035
        %s282 = sshrl.u32 %s281, 16
        %s283 = sxor.u32 %s281, %s282
        %v284 = vstv %s283
        %v285 = vxor.u32 %v274, %v284
        %v286 = vshrl.u32 %v285, 16
        %v287 = vxor.u32 %v285, %v286
        %v288 = vmul.u32 %v287, 2146121005
        %v289 = vshrl.u32 %v288, 15
        %v290 = vxor.u32 %v288, %v289
        %v291 = vmul.u32 %v290, 2221713035
        %v292 = vshrl.u32 %v291, 16
        %v293 = vxor.u32 %v291, %v292
        %v294 = vshrl.u32 %v293, 8
        %v295 = vcvt.s32.f32 %v294
        %v296 = vmul.f32 %v295, 5.9604645e-08
        %v297 = vadd.f32 %v296, 0.0
        %v298 = vadd.s32 %v274, 1
        %v299 = vxor.u32 %v298, %v284
        %v300 = vshrl.u32 %v299, 16
        %v301 = vxor.u32 %v299, %v300
        %v302 = vmul.u32 %v301, 2146121005
        %v303 = vshrl.u32 %v302, 15
        %v304 = vxor.u32 %v302, %v303
        %v305 = vmul.u32 %v304, 2221713035
        %v306 = vshrl.u32 %v305, 16
        %v307 = vxor.u32 %v305, %v306
        %v308 = vshrl.u32 %v307, 8
        %v309 = vcvt.s32.f32 %v308
        %v310 = vmul.f32 %v309, 5.9604645e-08
        %v311 = vadd.f32 %v297, %v310
        %v312 = vadd.s32 %v274, 2
        %v313 = vxor.u32 %v312, %v284
        %v314 = vshrl.u32 %v313, 16
        %v315 = vxor.u32 %v313, %v314
        %v316 = vmul.u32 %v315, 2146121005
        %v317 = vshrl.u32 %v316, 15
        %v318 = vxor.u32 %v316, %v317
        %v319 = vmul.u32 %v318, 2221713035
        %v320 = vshrl.u32 %v319, 16
        %v321 = vxor.u32 %v319, %v320
        %v322 = vshrl.u32 %v321, 8
        %v323 = vcvt.s32.f32 %v322
        %v324 = vmul.f32 %v323, 5.9604645e-08
        %v325 = vadd.f32 %v311, %v324
        %v326 = vadd.s32 %v274, 3
        %v327 = vxor.u32 %v326, %v284
        %v328 = vshrl.u32 %v327, 16
        %v329 = vxor.u32 %v327, %v328
        %v330 = vmul.u32 %v329, 2146121005
        %v331 = vshrl.u32 %v330, 15
        %v332 = vxor.u32 %v330, %v331
        %v333 = vmul.u32 %v332, 2221713035
        %v334 = vshrl.u32 %v333, 16
        %v335 = vxor.u32 %v333, %v334
        %v336 = vshrl.u32 %v335, 8
        %v337 = vcvt.s32.f32 %v336
        %v338 = vmul.f32 %v337, 5.9604645e-08
        %v339 = vadd.f32 %v325, %v338
        %v340 = vadd.s32 %v274, 4
        %v341 = vxor.u32 %v340, %v284
        %v342 = vshrl.u32 %v341, 16
        %v343 = vxor.u32 %v341, %v342
        %v344 = vmul.u32 %v343, 2146121005
        %v345 = vshrl.u32 %v344, 15
        %v346 = vxor.u32 %v344, %v345
        %v347 = vmul.u32 %v346, 2221713035
        %v348 = vshrl.u32 %v347, 16
        %v349 = vxor.u32 %v347, %v348
        %v350 = vshrl.u32 %v349, 8
        %v351 = vcvt.s32.f32 %v350
        %v352 = vmul.f32 %v351, 5.9604645e-08
        %v353 = vadd.f32 %v339, %v352
        %v354 = vadd.s32 %v274, 5
        %v355 = vxor.u32 %v354, %v284
        %v356 = vshrl.u32 %v355, 16
        %v357 = vxor.u32 %v355, %v356
        %v358 = vmul.u32 %v357, 2146121005
        %v359 = vshrl.u32 %v358, 15
        %v360 = vxor.u32 %v358, %v359
        %v361 = vmul.u32 %v360, 2221713035
        %v362 = vshrl.u32 %v361, 16
        %v363 = vxor.u32 %v361, %v362
        %v364 = vshrl.u32 %v363, 8
        %v365 = vcvt.s32.f32 %v364
        %v366 = vmul.f32 %v365, 5.9604645e-08
        %v367 = vadd.f32 %v353, %v366
        %v368 = vadd.s32 %v274, 6
        %v369 = vxor.u32 %v368, %v284
        %v370 = vshrl.u32 %v369, 16
        %v371 = vxor.u32 %v369, %v370
        %v372 = vmul.u32 %v371, 2146121005
        %v373 = vshrl.u32 %v372, 15
        %v374 = vxor.u32 %v372, %v373
        %v375 = vmul.u32 %v374, 2221713035
        %v376 = vshrl.u32 %v375, 16
        %v377 = vxor.u32 %v375, %v376
        %v378 = vshrl.u32 %v377, 8
        %v379 = vcvt.s32.f32 %v378
        %v380 = vmul.f32 %v379, 5.9604645e-08
        %v381 = vadd.f32 %v367, %v380
        %v382 = vadd.s32 %v274, 7
        %v383 = vxor.u32 %v382, %v284
        %v384 = vshrl.u32 %v383, 16
        %v385 = vxor.u32 %v383, %v384
        %v386 = vmul.u32 %v385, 2146121005
        %v387 = vshrl.u32 %v386, 15
        %v388 = vxor.u32 %v386, %v387
        %v389 = vmul.u32 %v388, 2221713035
        %v390 = vshrl.u32 %v389, 16
        %v391 = vxor.u32 %v389, %v390
        %v392 = vshrl.u32 %v391, 8
        %v393 = vcvt.s32.f32 %v392
        %v394 = vmul.f32 %v393, 5.9604645e-08
        %v395 = vadd.f32 %v381, %v394
        %v396 = vadd.s32 %v274, 8
        %v397 = vxor.u32 %v396, %v284
        %v398 = vshrl.u32 %v397, 16
        %v399 = vxor.u32 %v397, %v398
        %v400 = vmul.u32 %v399, 2146121005
        %v401 = vshrl.u32 %v400, 15
        %v402 = vxor.u32 %v400, %v401
        %v403 = vmul.u32 %v402, 2221713035
        %v404 = vshrl.u32 %v403, 16
        %v405 = vxor.u32 %v403, %v404
        %v406 = vshrl.u32 %v405, 8
        %v407 = vcvt.s32.f32 %v406
        %v408 = vmul.f32 %v407, 5.9604645e-08
        %v409 = vadd.f32 %v395, %v408
        %v410 = vadd.s32 %v274, 9
        %v411 = vxor.u32 %v410, %v284
        %v412 = vshrl.u32 %v411, 16
        %v413 = vxor.u32 %v411, %v412
        %v414 = vmul.u32 %v413, 2146121005
        %v415 = vshrl.u32 %v414, 15
        %v416 = vxor.u32 %v414, %v415
        %v417 = vmul.u32 %v416, 2221713035
        %v418 = vshrl.u32 %v417, 16
        %v419 = vxor.u32 %v417, %v418
        %v420 = vshrl.u32 %v419, 8
        %v421 = vcvt.s32.f32 %v420
        %v422 = vmul.f32 %v421, 5.9604645e-08
        %v423 = vadd.f32 %v409, %v422
        %v424 = vadd.s32 %v274, 10
        %v425 = vxor.u32 %v424, %v284
        %v426 = vshrl.u32 %v425, 16
        %v427 = vxor.u32 %v425, %v426
        %v428 = vmul.u32 %v427, 2146121005
        %v429 = vshrl.u32 %v428, 15
        %v430 = vxor.u32 %v428, %v429
        %v431 = vmul.u32 %v430, 2221713035
        %v432 = vshrl.u32 %v431, 16
        %v433 = vxor.u32 %v431, %v432
        %v434 = vshrl.u32 %v433, 8
        %v435 = vcvt.s32.f32 %v434
        %v436 = vmul.f32 %v435, 5.9604645e-08
        %v437 = vadd.f32 %v423, %v436
        %v438 = vadd.s32 %v274, 11
        %v439 = vxor.u32 %v438, %v284
        %v440 = vshrl.u32 %v439, 16
        %v441 = vxor.u32 %v439, %v440
        %v442 = vmul.u32 %v441, 2146121005
        %v443 = vshrl.u32 %v442, 15
        %v444 = vxor.u32 %v442, %v443
        %v445 = vmul.u32 %v444, 2221713035
        %v446 = vshrl.u32 %v445, 16
        %v447 = vxor.u32 %v445, %v446
        %v448 = vshrl.u32 %v447, 8
        %v449 = vcvt.s32.f32 %v448
        %v450 = vmul.f32 %v449, 5.9604645e-08
        %v451 = vadd.f32 %v437, %v450
        %v452 = vsub.f32 %v451, 6.0
        %v453 = vmul.f32 %v452, 0.1
        %v454 = vadd.f32 %v261, %v453
        %vm455 = vcmask 130048
        %456 = vst.msk [vmem:[%s192] sm:$0xff] %vm455, %v454
        %s457 = sand.u32 %s109, 1
        %s458 = scalar_lea.sflag [#allocation4], %s457
        %s459 = sand.u32 %s109, 1
        %s460 = smul.addr %s459, 8
        %s461 = scalar_lea.vmem [#allocation6], %s460
        // Predicated region
        $region37: #{tpu_custom_call.1} parent=31 // pred_check
          %p462 = pneg %p119
        $region38: #{tpu_custom_call.1} parent=31 // pred_check_branch
          %464 = sbr.rel (%p462) target = $region40
        $region39: #{tpu_custom_call.1} parent=31 // pred_region
          %s466 = ssub.s32 128, 128
          %467 = vsyncadd %s458, %s466
          %s468 = smul.addr %s23, 2
          %s469 = sadd.s32 %s24, %s468
          %s470 = smul.addr %s469, 128
          %s471 = scalar_lea.hbm %s3, %s470
          %s473 = sshll.u32 %s461, 4
          %s474 = int_to_ptr.vmem [resolvable:$true] %s473
          %476 = dma.vmem_to_hbm [thread:$0]  %s474, 128, %s471, %s458
        $region40: #{tpu_custom_call.1} parent=31 // pred_fallthru
          _
      $region32: #{tpu_custom_call.1} parent=5 // pred_fallthru
        _
      %p477 = scmp.le.s32.totalorder 2, %s14
      // Predicated region
      $region41: #{tpu_custom_call.1} parent=5 // pred_check
        %p478 = pneg %p477
      $region42: #{tpu_custom_call.1} parent=5 // pred_check_branch
        %480 = sbr.rel (%p478) target = $region44
      $region43: #{tpu_custom_call.1} parent=5 // pred_region
        %s481 = ssub.s32 %s14, 2
        // Predicated region
        $region45: #{tpu_custom_call.1} parent=43 // pred_check
          %p482 = pneg %p125
        $region46: #{tpu_custom_call.1} parent=43 // pred_check_branch
          %484 = sbr.rel (%p482) target = $region48
        $region47: #{tpu_custom_call.1} parent=43 // pred_region
          %s485 = sand.u32 %s110, 1
          %s486 = scalar_lea.sflag [#allocation4], %s485
          %s487 = sand.u32 %s110, 1
          %s488 = smul.addr %s487, 8
          %s489 = scalar_lea.vmem [#allocation6], %s488
          %490 = dma.done %s486, 128
        $region48: #{tpu_custom_call.1} parent=43 // pred_fallthru
          _
      $region44: #{tpu_custom_call.1} parent=5 // pred_fallthru
        _
    $region6: #{tpu_custom_call.1} parent=1 // loop_footer
      %s18 = sadd.s32 1, %s14
    $region7: #{tpu_custom_call.1} parent=1 // loop_footer_branch
      %13 = sbr.rel target = $region3
    $region8: #{tpu_custom_call.1} parent=1 // loop_exit
      _
    %491 = vsyncpa [#allocation4], 1
    %s492 = scalar_lea.sflag [#allocation4], 1
    %493 = vsyncpa %s492, 1
    %494 = vsyncpa [#allocation5], 1
    %s495 = scalar_lea.sflag [#allocation5], 1
    %496 = vsyncpa %s495, 1

</llo_original>
